<compile_context>
chip_gen: v5e
topology: v5e:2x2
jax: 0.10.0
libtpu: 0.0.40
codegen_flags: <defaults>
</compile_context>

<pallas_src>
import jax
import jax.numpy as jnp
from jax.experimental import pallas as pl
from jax.experimental.pallas import tpu as pltpu

_EPS = 1e-5


# --------------------------------------------------------------------------
# shared in-kernel conv helper
# --------------------------------------------------------------------------
def _conv_rows(xrows, w_ref, tH, W, C_in):
    """3x3 conv over `xrows` (tH+2, W, C_in), halo rows included, MXU dtype.

    Width taps are folded into the contraction dim (K = 3*C_in); the ky shifts
    below are leading-axis views (no relayout).  Returns f32 (tH*W, C_out_p).
    """
    rows = tH + 2
    zc = jnp.zeros((rows, 1, C_in), xrows.dtype)
    xp = jnp.concatenate([zc, xrows, zc], axis=1)                # (rows, W+2, C)
    xw = jnp.concatenate(
        [xp[:, 0:W], xp[:, 1:W + 1], xp[:, 2:W + 2]], axis=-1)   # (rows, W, 3C)
    k3 = 3 * C_in
    acc = jnp.dot(xw[0:tH].reshape(tH * W, k3), w_ref[0],
                  preferred_element_type=jnp.float32)
    acc = acc + jnp.dot(xw[1:tH + 1].reshape(tH * W, k3), w_ref[1],
                        preferred_element_type=jnp.float32)
    acc = acc + jnp.dot(xw[2:tH + 2].reshape(tH * W, k3), w_ref[2],
                        preferred_element_type=jnp.float32)
    return acc


# --------------------------------------------------------------------------
# kernels
# --------------------------------------------------------------------------
def _make_fused_kernel(H, W, C_in, C_out_p, C_store, norm, activation,
                       use_bias, mxu_dtype):
    """Whole image per batch element: conv (+bias) (+InstanceNorm) (+SiLU)."""
    def kernel(x_ref, w_ref, *rest):
        if use_bias:
            b_ref, o_ref = rest
        else:
            (o_ref,) = rest
        xt = x_ref[0].astype(mxu_dtype)                          # (H, W, C_in)
        zr = jnp.zeros((1, W, C_in), mxu_dtype)
        xrows = jnp.concatenate([zr, xt, zr], axis=0)            # (H+2, W, C_in)
        y = _conv_rows(xrows, w_ref, H, W, C_in)                 # (H*W, C_out_p) f32
        if use_bias:                  # only when norm=False (bias dead under IN)
            y = y + b_ref[...]
        if norm:
            # Exact two-pass InstanceNorm over the VMEM-resident image
            # (avoids the E[y^2]-mean^2 cancellation issue).
            inv_n = 1.0 / float(H * W)
            mean = jnp.sum(y, axis=0, keepdims=True) * inv_n
            yc = y - mean
            var = jnp.sum(yc * yc, axis=0, keepdims=True) * inv_n
            y = yc * jax.lax.rsqrt(var + _EPS)
        if C_store != C_out_p:
            y = y[:, :C_store]
        if activation:
            y = y * jax.nn.sigmoid(y)                            # SiLU / swish
        o_ref[0] = y.reshape(H, W, C_store).astype(o_ref.dtype)
    return kernel


def _make_tiled_conv_kernel(tH, W, C_in, C_out_p, C_store, norm, activation,
                            use_bias, mxu_dtype):
    """Row-tiled conv.  If norm: write f32 conv tile + accumulate per-channel
    sum/sumsq across row tiles.  Else: fuse bias/SiLU and write final tile."""
    def kernel(x_ref, halo_ref, w_ref, *rest):
        refs = list(rest)
        b_ref = refs.pop(0) if use_bias else None
        y_ref = refs.pop(0)
        stats_ref = refs.pop(0) if norm else None

        xt = x_ref[0].astype(mxu_dtype)                          # (tH, W, C_in)
        hl = halo_ref[0, 0].astype(mxu_dtype)                    # (2, W, C_in)
        xrows = jnp.concatenate([hl[0:1], xt, hl[1:2]], axis=0)  # (tH+2, W, C_in)
        y = _conv_rows(xrows, w_ref, tH, W, C_in)                # (tH*W, C_out_p)
        if use_bias:
            y = y + b_ref[...]
        if C_store != C_out_p:
            y = y[:, :C_store]

        if norm:
            h = pl.program_id(1)

            @pl.when(h == 0)
            def _():
                stats_ref[...] = jnp.zeros_like(stats_ref)

            tile_stats = jnp.concatenate(
                [jnp.sum(y, axis=0, keepdims=True),
                 jnp.sum(y * y, axis=0, keepdims=True)], axis=0)  # (2, C_store)
            stats_ref[0] += tile_stats
        elif activation:
            y = y * jax.nn.sigmoid(y)

        y_ref[0] = y.reshape(tH, W, C_store).astype(y_ref.dtype)
    return kernel


def _make_norm_kernel(H, W, activation):
    """Second sweep of the tiled path: normalize with the full-image stats."""
    inv_n = 1.0 / float(H * W)

    def kernel(y_ref, stats_ref, o_ref):
        y = y_ref[0].astype(jnp.float32)                         # (tH, W, C)
        st = stats_ref[0]                                        # (2, C) f32
        mean = st[0] * inv_n                                     # (C,)
        # TODO(synk): sum/sumsq variance can lose precision when |mean|>>std;
        # the fused path uses a true two-pass variance, the tiled path accepts
        # this to avoid a third HBM sweep.
        var = jnp.maximum(st[1] * inv_n - mean * mean, 0.0)
        yn = (y - mean) * jax.lax.rsqrt(var + _EPS)
        if activation:
            yn = yn * jax.nn.sigmoid(yn)
        o_ref[0] = yn.astype(o_ref.dtype)
    return kernel


# --------------------------------------------------------------------------
# VMEM budgeting / tile selection
# --------------------------------------------------------------------------
def _vmem_budget_bytes():
    """Generation-aware compiler VMEM limit."""
    try:
        cap = pltpu.get_tpu_info().vmem_capacity_bytes
    except Exception:                      # interpret mode / older runtimes
        cap = 128 * 1024 * 1024
    if cap >= 96 * 1024 * 1024:            # v5e / v6e: 128 MiB physical
        return 48 * 1024 * 1024
    return 36 * 1024 * 1024                # v7x: 64 MiB -> leave headroom


def _tile_vmem_bytes(tH, W, C_in, C_out_p, C_store, x_item, out_item,
                     fused_norm):
    """Rough per-grid-step VMEM estimate (double-buffered blocks + temps)."""
    rows = tH + 2
    mxu_item = 2                                    # bf16 window buffers
    b = 2 * tH * W * C_in * x_item                  # input block (double buf)
    b += rows * W * C_in * (x_item + mxu_item)      # halo'd rows + bf16 cast
    b += rows * (W + 2) * C_in * mxu_item           # width-padded rows
    b += rows * W * 3 * C_in * mxu_item             # folded (K=3*C_in) window
    b += 2 * tH * W * C_out_p * 4                   # f32 acc + one temporary
    if fused_norm:
        b += 2 * tH * W * C_out_p * 4               # centered copy / norm temps
    b += 2 * tH * W * C_store * out_item            # output block (double buf)
    return b


# --------------------------------------------------------------------------
# wrappers
# --------------------------------------------------------------------------
def regular_conv_block_nhwc(x_nhwc, weight, bias, *, norm=True, activation=False,
                            mxu_dtype=jnp.bfloat16, out_dtype=None,
                            pad_out_channels=False, tile_h=None):
    """NHWC entry point (preferred on TPU - no layout transposes).

    x_nhwc: (N, H, W, C_in); weight: (C_out, C_in, 3, 3); bias: (C_out,).
    Returns (N, H, W, C_out), or (N, H, W, C_out_p) when pad_out_channels=True
    (keeps the MXU-padded channel layout for chained blocks: no pad/slice HBM
    passes between blocks).
    """
    N, H, W, C_in = x_nhwc.shape
    C_out = weight.shape[0]
    if out_dtype is None:
        out_dtype = x_nhwc.dtype
    # Dense MXU N dim.  (On v6e/v7x, rounding to 256 is ideal when C_out>128.)
    C_out_p = max(128, ((C_out + 127) // 128) * 128)
    C_store = C_out_p if pad_out_channels else C_out
    use_bias = (bias is not None) and (not norm)    # bias dead under InstanceNorm

    # (C_out, C_in, 3, 3) -> (ky, kx, C_in, C_out) -> (ky, kx*C_in, C_out):
    # width taps folded into K, matching the in-kernel window buffer layout.
    w = jnp.transpose(weight, (2, 3, 1, 0)).reshape(3, 3 * C_in, C_out)
    if C_out_p != C_out:
        w = jnp.pad(w, ((0, 0), (0, 0), (0, C_out_p - C_out)))
    w = w.astype(mxu_dtype)

    if use_bias:
        b = bias.astype(jnp.float32)
        if C_out_p != C_out:
            b = jnp.pad(b, (0, C_out_p - C_out))
        b = b.reshape(1, C_out_p)

    x_item = jnp.dtype(x_nhwc.dtype).itemsize
    out_item = jnp.dtype(out_dtype).itemsize
    vmem_limit = _vmem_budget_bytes()
    tile_budget = int(vmem_limit * 0.7)

    # ---- row tile: whole image if it fits the budget, else largest divisor
    # of H that does (tile_h overrides, for tests/tuning).
    if tile_h is not None:
        if H % tile_h != 0:
            raise ValueError("tile_h must divide H")
        tH = tile_h
    elif _tile_vmem_bytes(H, W, C_in, C_out_p, C_store, x_item, out_item,
                          norm) <= tile_budget:
        tH = H
    else:
        tH = 1
        for d in range(H - 1, 0, -1):
            if H % d == 0 and _tile_vmem_bytes(
                    d, W, C_in, C_out_p, C_store, x_item, out_item,
                    False) <= tile_budget:
                tH = d
                break

    flops = 2 * N * H * W * 9 * C_in * C_out_p

    # =====================================================================
    # Fused single-pass path (whole image per grid step).
    # =====================================================================
    if tH == H:
        kernel = _make_fused_kernel(H, W, C_in, C_out_p, C_store, norm,
                                    activation, use_bias, mxu_dtype)
        inputs = [x_nhwc, w]
        in_specs = [
            pl.BlockSpec((1, H, W, C_in), lambda n: (n, 0, 0, 0)),
            pl.BlockSpec((3, 3 * C_in, C_out_p), lambda n: (0, 0, 0)),
        ]
        if use_bias:
            inputs.append(b)
            in_specs.append(pl.BlockSpec((1, C_out_p), lambda n: (0, 0)))

        return pl.pallas_call(
            kernel,
            out_shape=jax.ShapeDtypeStruct((N, H, W, C_store), out_dtype),
            grid_spec=pltpu.PrefetchScalarGridSpec(
                num_scalar_prefetch=0,
                grid=(N,),
                in_specs=in_specs,
                out_specs=pl.BlockSpec((1, H, W, C_store),
                                       lambda n: (n, 0, 0, 0))),
            compiler_params=pltpu.CompilerParams(
                dimension_semantics=("parallel",),
                vmem_limit_bytes=vmem_limit),
            cost_estimate=pl.CostEstimate(
                flops=flops,
                transcendentals=N * H * W * C_store * int(activation)
                + N * C_out_p * int(norm),
                bytes_accessed=x_nhwc.size * x_item + w.size * 2
                + N * H * W * C_store * out_item),
        )(*inputs)

    # =====================================================================
    # Row-tiled path (image does not fit VMEM / tile_h forced).
    # =====================================================================
    n_ht = H // tH
    # Halo rows (1 above + 1 below each tile), gathered once outside the
    # kernel; tiny (2 rows per tile) and keeps every block auto-pipelined.
    zrow = jnp.zeros((N, 1, W, C_in), x_nhwc.dtype)
    top = jnp.concatenate([zrow, x_nhwc[:, tH - 1::tH][:, :n_ht - 1]], axis=1)
    bot = jnp.concatenate([x_nhwc[:, tH::tH], zrow], axis=1)
    halo = jnp.stack([top, bot], axis=2)            # (N, n_ht, 2, W, C_in)

    conv_kernel = _make_tiled_conv_kernel(tH, W, C_in, C_out_p, C_store, norm,
                                          activation, use_bias, mxu_dtype)
    inputs = [x_nhwc, halo, w]
    in_specs = [
        pl.BlockSpec((1, tH, W, C_in), lambda n, h: (n, h, 0, 0)),
        pl.BlockSpec((1, 1, 2, W, C_in), lambda n, h: (n, h, 0, 0, 0)),
        pl.BlockSpec((3, 3 * C_in, C_out_p), lambda n, h: (0, 0, 0)),
    ]
    if use_bias:
        inputs.append(b)
        in_specs.append(pl.BlockSpec((1, C_out_p), lambda n, h: (0, 0)))

    if norm:
        mid_dtype = jnp.float32          # keep the pre-norm conv output exact
        out_shape = (jax.ShapeDtypeStruct((N, H, W, C_store), mid_dtype),
                     jax.ShapeDtypeStruct((N, 2, C_store), jnp.float32))
        out_specs = (pl.BlockSpec((1, tH, W, C_store), lambda n, h: (n, h, 0, 0)),
                     pl.BlockSpec((1, 2, C_store), lambda n, h: (n, 0, 0)))
    else:
        mid_dtype = out_dtype
        out_shape = jax.ShapeDtypeStruct((N, H, W, C_store), out_dtype)
        out_specs = pl.BlockSpec((1, tH, W, C_store), lambda n, h: (n, h, 0, 0))

    conv_out = pl.pallas_call(
        conv_kernel,
        out_shape=out_shape,
        grid_spec=pltpu.PrefetchScalarGridSpec(
            num_scalar_prefetch=0,
            grid=(N, n_ht),
            in_specs=in_specs,
            out_specs=out_specs),
        compiler_params=pltpu.CompilerParams(
            dimension_semantics=("parallel", "arbitrary"),
            vmem_limit_bytes=vmem_limit),
        cost_estimate=pl.CostEstimate(
            flops=flops,
            transcendentals=N * H * W * C_store * int(activation and not norm),
            bytes_accessed=x_nhwc.size * x_item + halo.size * x_item
            + w.size * 2
            + N * H * W * C_store * jnp.dtype(mid_dtype).itemsize),
    )(*inputs)

    if not norm:
        return conv_out

    y_mid, stats = conv_out
    norm_kernel = _make_norm_kernel(H, W, activation)
    return pl.pallas_call(
        norm_kernel,
        out_shape=jax.ShapeDtypeStruct((N, H, W, C_store), out_dtype),
        grid_spec=pltpu.PrefetchScalarGridSpec(
            num_scalar_prefetch=0,
            grid=(N, n_ht),
            in_specs=[
                pl.BlockSpec((1, tH, W, C_store), lambda n, h: (n, h, 0, 0)),
                pl.BlockSpec((1, 2, C_store), lambda n, h: (n, 0, 0)),
            ],
            out_specs=pl.BlockSpec((1, tH, W, C_store),
                                   lambda n, h: (n, h, 0, 0))),
        compiler_params=pltpu.CompilerParams(
            dimension_semantics=("parallel", "parallel"),
            vmem_limit_bytes=vmem_limit),
        cost_estimate=pl.CostEstimate(
            flops=6 * N * H * W * C_store,
            transcendentals=N * H * W * C_store * int(activation) + N * C_store,
            bytes_accessed=y_mid.size * 4 + stats.size * 4
            + N * H * W * C_store * out_item),
    )(y_mid, stats)


def regular_conv_block(x_nchw, weight, bias, *, norm=True, activation=False,
                       mxu_dtype=jnp.bfloat16, tile_h=None):
    """NCHW adapter matching the PyTorch module interface.

    If the surrounding model can stay NHWC (and keep padded channels between
    blocks), call regular_conv_block_nhwc directly and save the HBM transpose
    passes per block.
    """
    x = jnp.transpose(x_nchw, (0, 2, 3, 1))
    out = regular_conv_block_nhwc(x, weight, bias, norm=norm,
                                  activation=activation, mxu_dtype=mxu_dtype,
                                  pad_out_channels=False, tile_h=tile_h)
    return jnp.transpose(out, (0, 3, 1, 2))


# --------------------------------------------------------------------------
# reference + test
# --------------------------------------------------------------------------
def _reference(x_nchw, weight, bias, *, norm=True, activation=False,
               mxu_dtype=jnp.bfloat16):
    """Pure-JAX reference (same bf16 MXU operands, f32 accumulation)."""
    y = jax.lax.conv_general_dilated(
        x_nchw.astype(mxu_dtype), weight.astype(mxu_dtype),
        window_strides=(1, 1), padding=((1, 1), (1, 1)),
        dimension_numbers=("NCHW", "OIHW", "NCHW"),
        preferred_element_type=jnp.float32)
    if not norm:
        y = y + bias.reshape(1, -1, 1, 1).astype(jnp.float32)
    else:
        mean = jnp.mean(y, axis=(2, 3), keepdims=True)
        var = jnp.mean(jnp.square(y - mean), axis=(2, 3), keepdims=True)
        y = (y - mean) * jax.lax.rsqrt(var + _EPS)
    if activation:
        y = y * jax.nn.sigmoid(y)
    return y.astype(x_nchw.dtype)


if __name__ == "__main__":
    key = jax.random.PRNGKey(0)
    kx, kw, kb = jax.random.split(key, 3)

    N, C_in, H, W = 2, 4, 16, 16
    C_out = C_in  # out_channels defaults to in_channels

    x = jax.random.normal(kx, (N, C_in, H, W), dtype=jnp.float32)
    weight = jax.random.normal(kw, (C_out, C_in, 3, 3), dtype=jnp.float32) * 0.1
    bias = jax.random.normal(kb, (C_out,), dtype=jnp.float32) * 0.1

    tol = dict(atol=2e-3, rtol=2e-3)

    # 1) Module defaults (norm=True, activation=False) - fused path.
    out = jax.block_until_ready(
        regular_conv_block(x, weight, bias, norm=True, activation=False))
    ref = _reference(x, weight, bias, norm=True, activation=False)
    assert out.shape == (N, C_out, H, W)
    assert jnp.allclose(out, ref, **tol), "mismatch (fused norm path)"

    # 2) bias + SiLU (norm=False, activation=True) - fused path.
    out2 = jax.block_until_ready(
        regular_conv_block(x, weight, bias, norm=False, activation=True))
    ref2 = _reference(x, weight, bias, norm=False, activation=True)
    assert jnp.allclose(out2, ref2, **tol), "mismatch (fused bias+SiLU path)"

    # 3) Forced row tiling, norm + SiLU - exercises conv+stats and norm kernels.
    out3 = jax.block_until_ready(
        regular_conv_block(x, weight, bias, norm=True, activation=True,
                           tile_h=4))
    ref3 = _reference(x, weight, bias, norm=True, activation=True)
    assert jnp.allclose(out3, ref3, **tol), "mismatch (tiled norm path)"

    # 4) Forced row tiling, bias + SiLU (no norm) - single tiled kernel.
    out4 = jax.block_until_ready(
        regular_conv_block(x, weight, bias, norm=False, activation=True,
                           tile_h=8))
    assert jnp.allclose(out4, ref2, **tol), "mismatch (tiled bias+SiLU path)"

    print("KERNEL_OK")
</pallas_src>

<mosaic_0001>
module attributes {stable_mosaic.version = 11 : i64} {
  func.func @kernel(%arg0: i32, %arg1: memref<1x16x16x4xf32, #tpu.memory_space<vmem>>, %arg2: memref<3x12x128xbf16, #tpu.memory_space<vmem>>, %arg3: memref<1x16x16x4xf32, #tpu.memory_space<vmem>>) attributes {dimension_semantics = [#tpu.dimension_semantics<parallel>], iteration_bounds = array<i64: 2>, scalar_prefetch = 0 : i64, scratch_operands = 0 : i64, tpu.core_type = #tpu.core_type<tc>, window_params = [{transform_indices = @transform_0, window_bounds = array<i64: 1, 16, 16, 4>}, {pipeline_mode = #tpu.pipeline_mode<synchronous>, transform_indices = @transform_1, window_bounds = array<i64: 3, 12, 128>}, {transform_indices = @transform_2, window_bounds = array<i64: 1, 16, 16, 4>}]} {
    %c0 = arith.constant 0 : index
    %c0_0 = arith.constant 0 : index
    %c0_1 = arith.constant 0 : index
    %c0_2 = arith.constant 0 : index
    %0 = vector.load %arg1[%c0, %c0_0, %c0_1, %c0_2] : memref<1x16x16x4xf32, #tpu.memory_space<vmem>>, vector<1x16x16x4xf32>
    %1 = vector.shape_cast %0 : vector<1x16x16x4xf32> to vector<16x16x4xf32>
    %2 = arith.truncf %1 : vector<16x16x4xf32> to vector<16x16x4xbf16>
    %cst = arith.constant 0.000000e+00 : bf16
    %3 = vector.broadcast %cst : bf16 to vector<1x16x4xbf16>
    %4 = tpu.concatenate %3, %2, %3 in 0 : vector<1x16x4xbf16>, vector<16x16x4xbf16>, vector<1x16x4xbf16> -> vector<18x16x4xbf16>
    %cst_3 = arith.constant 0.000000e+00 : bf16
    %5 = vector.broadcast %cst_3 : bf16 to vector<18x1x4xbf16>
    %6 = tpu.concatenate %5, %4, %5 in 1 : vector<18x1x4xbf16>, vector<18x16x4xbf16>, vector<18x1x4xbf16> -> vector<18x18x4xbf16>
    %7 = vector.extract_strided_slice %6 {offsets = [0, 0, 0], sizes = [18, 16, 4], strides = [1, 1, 1]} : vector<18x18x4xbf16> to vector<18x16x4xbf16>
    %8 = vector.extract_strided_slice %6 {offsets = [0, 1, 0], sizes = [18, 16, 4], strides = [1, 1, 1]} : vector<18x18x4xbf16> to vector<18x16x4xbf16>
    %9 = vector.extract_strided_slice %6 {offsets = [0, 2, 0], sizes = [18, 16, 4], strides = [1, 1, 1]} : vector<18x18x4xbf16> to vector<18x16x4xbf16>
    %10 = tpu.concatenate %7, %8, %9 in 2 : vector<18x16x4xbf16>, vector<18x16x4xbf16>, vector<18x16x4xbf16> -> vector<18x16x12xbf16>
    %11 = vector.extract_strided_slice %10 {offsets = [0, 0, 0], sizes = [16, 16, 12], strides = [1, 1, 1]} : vector<18x16x12xbf16> to vector<16x16x12xbf16>
    %12 = vector.shape_cast %11 : vector<16x16x12xbf16> to vector<256x12xbf16>
    %c0_4 = arith.constant 0 : index
    %c0_5 = arith.constant 0 : index
    %c0_6 = arith.constant 0 : index
    %13 = vector.load %arg2[%c0_4, %c0_5, %c0_6] : memref<3x12x128xbf16, #tpu.memory_space<vmem>>, vector<1x12x128xbf16>
    %14 = vector.shape_cast %13 : vector<1x12x128xbf16> to vector<12x128xbf16>
    %cst_7 = arith.constant dense<0.000000e+00> : vector<256x128xf32>
    %15 = tpu.matmul %12, %14, %cst_7 {dimension_numbers = #tpu.dot_dimension_numbers<[1], [0], [0], [1], [0, 0, 1, 1], [], []>} : vector<256x12xbf16>, vector<12x128xbf16>, vector<256x128xf32> -> vector<256x128xf32>
    %16 = vector.extract_strided_slice %10 {offsets = [1, 0, 0], sizes = [16, 16, 12], strides = [1, 1, 1]} : vector<18x16x12xbf16> to vector<16x16x12xbf16>
    %17 = vector.shape_cast %16 : vector<16x16x12xbf16> to vector<256x12xbf16>
    %c1 = arith.constant 1 : index
    %c0_8 = arith.constant 0 : index
    %c0_9 = arith.constant 0 : index
    %18 = vector.load %arg2[%c1, %c0_8, %c0_9] : memref<3x12x128xbf16, #tpu.memory_space<vmem>>, vector<1x12x128xbf16>
    %19 = vector.shape_cast %18 : vector<1x12x128xbf16> to vector<12x128xbf16>
    %cst_10 = arith.constant dense<0.000000e+00> : vector<256x128xf32>
    %20 = tpu.matmul %17, %19, %cst_10 {dimension_numbers = #tpu.dot_dimension_numbers<[1], [0], [0], [1], [0, 0, 1, 1], [], []>} : vector<256x12xbf16>, vector<12x128xbf16>, vector<256x128xf32> -> vector<256x128xf32>
    %21 = arith.addf %15, %20 : vector<256x128xf32>
    %22 = vector.extract_strided_slice %10 {offsets = [2, 0, 0], sizes = [16, 16, 12], strides = [1, 1, 1]} : vector<18x16x12xbf16> to vector<16x16x12xbf16>
    %23 = vector.shape_cast %22 : vector<16x16x12xbf16> to vector<256x12xbf16>
    %c2 = arith.constant 2 : index
    %c0_11 = arith.constant 0 : index
    %c0_12 = arith.constant 0 : index
    %24 = vector.load %arg2[%c2, %c0_11, %c0_12] : memref<3x12x128xbf16, #tpu.memory_space<vmem>>, vector<1x12x128xbf16>
    %25 = vector.shape_cast %24 : vector<1x12x128xbf16> to vector<12x128xbf16>
    %cst_13 = arith.constant dense<0.000000e+00> : vector<256x128xf32>
    %26 = tpu.matmul %23, %25, %cst_13 {dimension_numbers = #tpu.dot_dimension_numbers<[1], [0], [0], [1], [0, 0, 1, 1], [], []>} : vector<256x12xbf16>, vector<12x128xbf16>, vector<256x128xf32> -> vector<256x128xf32>
    %27 = arith.addf %21, %26 : vector<256x128xf32>
    %cst_14 = arith.constant dense<0.000000e+00> : vector<128xf32>
    %28 = vector.multi_reduction <add>, %27, %cst_14 [0] : vector<256x128xf32> to vector<128xf32>
    %29 = vector.shape_cast %28 : vector<128xf32> to vector<1x128xf32>
    %cst_15 = arith.constant 3.906250e-03 : f32
    %30 = vector.broadcast %cst_15 : f32 to vector<1x128xf32>
    %31 = arith.mulf %29, %30 : vector<1x128xf32>
    %32 = vector.broadcast %31 : vector<1x128xf32> to vector<256x128xf32>
    %33 = arith.subf %27, %32 : vector<256x128xf32>
    %34 = arith.mulf %33, %33 : vector<256x128xf32>
    %cst_16 = arith.constant dense<0.000000e+00> : vector<128xf32>
    %35 = vector.multi_reduction <add>, %34, %cst_16 [0] : vector<256x128xf32> to vector<128xf32>
    %36 = vector.shape_cast %35 : vector<128xf32> to vector<1x128xf32>
    %cst_17 = arith.constant 3.906250e-03 : f32
    %37 = vector.broadcast %cst_17 : f32 to vector<1x128xf32>
    %38 = arith.mulf %36, %37 : vector<1x128xf32>
    %cst_18 = arith.constant 9.99999974E-6 : f32
    %39 = vector.broadcast %cst_18 : f32 to vector<1x128xf32>
    %40 = arith.addf %38, %39 : vector<1x128xf32>
    %41 = math.rsqrt %40 : vector<1x128xf32>
    %42 = vector.broadcast %41 : vector<1x128xf32> to vector<256x128xf32>
    %43 = arith.mulf %33, %42 : vector<256x128xf32>
    %44 = vector.extract_strided_slice %43 {offsets = [0, 0], sizes = [256, 4], strides = [1, 1]} : vector<256x128xf32> to vector<256x4xf32>
    %45 = vector.shape_cast %44 : vector<256x4xf32> to vector<16x16x4xf32>
    %c0_19 = arith.constant 0 : index
    %c0_20 = arith.constant 0 : index
    %c0_21 = arith.constant 0 : index
    %c0_22 = arith.constant 0 : index
    %46 = vector.load %arg3[%c0_19, %c0_20, %c0_21, %c0_22] : memref<1x16x16x4xf32, #tpu.memory_space<vmem>>, vector<1x16x16x4xf32>
    %47 = vector.shape_cast %46 : vector<1x16x16x4xf32> to vector<16x16x4xf32>
    %48 = vector.shape_cast %45 : vector<16x16x4xf32> to vector<1x16x16x4xf32>
    tpu.vector_store %arg3[%c0_19, %c0_20, %c0_21, %c0_22], %48 {strides = array<i32>} : memref<1x16x16x4xf32, #tpu.memory_space<vmem>>, vector<1x16x16x4xf32>,
    return
  }
  func.func @transform_0(%arg0: i32) -> (i32, i32, i32, i32) {
    %c0_i32 = arith.constant 0 : i32
    %c0_i32_0 = arith.constant 0 : i32
    %c0_i32_1 = arith.constant 0 : i32
    %c0_i32_2 = arith.constant 0 : i32
    return %arg0, %c0_i32, %c0_i32_0, %c0_i32_1 : i32, i32, i32, i32
  }
  func.func @transform_1(%arg0: i32) -> (i32, i32, i32) {
    %c0_i32 = arith.constant 0 : i32
    %c0_i32_0 = arith.constant 0 : i32
    %c0_i32_1 = arith.constant 0 : i32
    %c0_i32_2 = arith.constant 0 : i32
    return %c0_i32, %c0_i32_0, %c0_i32_1 : i32, i32, i32
  }
  func.func @transform_2(%arg0: i32) -> (i32, i32, i32, i32) {
    %c0_i32 = arith.constant 0 : i32
    %c0_i32_0 = arith.constant 0 : i32
    %c0_i32_1 = arith.constant 0 : i32
    %c0_i32_2 = arith.constant 0 : i32
    return %arg0, %c0_i32, %c0_i32_0, %c0_i32_1 : i32, i32, i32, i32
  }
}

</mosaic_0001>

<llo_original>
// kernel: tpu_custom_call.1
$region0: #{tpu_custom_call.1}
  #allocation0 [shape = 'u32[]', space=smem, size = 0x4, offset = 0x4, fixed_abs, tag = 'smem constant byte address 0x4 - core index']
  #allocation1 [shape = 'u32[72,128]{1,0:T(1,128)}', space=vmem, size = 0x9000, scoped, tag = 'internal scratch']
  %s0 = inlined_call_operand.vmem [shape: f32[2,16,16,4], index: 0, kind: input, shape index: {}]
  %s1 = inlined_call_operand.vmem [shape: bf16[3,12,128], index: 1, kind: input, shape index: {}]
  %s2 = inlined_call_operand.vmem [shape: f32[2,16,16,4], index: 2, kind: output, shape index: {}]
  %s3 = sld [smem:[#allocation0]]
  $region41: #{tpu_custom_call.1} parent=0
    _
  %s5 = ssub.s32 1, %s3
  %s6 = scalar_select 0, %s5, %s3
  loop: start=0, step=1, limit=4
  $region2: #{tpu_custom_call.1} parent=0 // loop_pre_header
    _
  $region3: #{tpu_custom_call.1} parent=0 // loop_header
    %s8 = sphi 0, %s12
    %p9 = scmp.ge.s32.totalorder %s8, 4
    %s18 = sphi 0, %s20
    %s21 = sphi 0, %s18
    %s22 = sphi 0, %s21
    %s38 = sphi 0, %s22
    %s42 = sphi 0, %s42
    %s44 = sphi 0, %s42
    %s45 = sphi 0, %s44
    %s59 = sphi 0, %s45
    %s65 = sphi 0, %s67
    %s68 = sphi 0, %s65
    %s69 = sphi 0, %s68
    %s85 = sphi 0, %s69
  $region4: #{tpu_custom_call.1} parent=0 // loop_header_branch
    %11 = sbr.rel (%p9) target = $region8
  $region5: #{tpu_custom_call.1} parent=0 // loop_body
    %s13 = ssub.s32 %s8, 1
    %s14 = ssub.s32 %s8, 2
    %s15 = sadd.s32 %s8, 1
    %s16 = ssub.s32 %s8, %s15
    %p17 = scmp.eq.s32.totalorder %s16, 0
    %s19 = sadd.s32 %s18, 1
    %s20 = scalar_select %p17, %s18, %s19
    %p23 = pneg %p17
    %p24 = scmp.eq.s32.totalorder %s8, 1
    %p25 = por %p23, %p24
    %p26 = scmp.ne.s32.totalorder %s18, %s21
    %p27 = scmp.eq.s32.totalorder %s8, 0
    %p28 = por %p26, %p27
    %p29 = scmp.ne.s32.totalorder %s18, %s21
    %p30 = scmp.eq.s32.totalorder %s13, 1
    %p31 = por %p29, %p30
    %p32 = scmp.ne.s32.totalorder %s21, %s22
    %p33 = scmp.eq.s32.totalorder %s13, 0
    %p34 = por %p32, %p33
    %p35 = scmp.ne.s32.totalorder %s21, %s22
    %p36 = scmp.eq.s32.totalorder %s14, 1
    %p37 = por %p35, %p36
    %p39 = scmp.ne.s32.totalorder %s22, %s38
    %p40 = scmp.eq.s32.totalorder %s14, 0
    %p41 = por %p39, %p40
    %s43 = sadd.s32 %s42, 1
    %p46 = scmp.eq.s32.totalorder %s8, 1
    %p47 = scmp.ne.s32.totalorder %s42, %s44
    %p48 = scmp.eq.s32.totalorder %s8, 0
    %p49 = por %p47, %p48
    %p50 = scmp.ne.s32.totalorder %s42, %s44
    %p51 = scmp.eq.s32.totalorder %s13, 1
    %p52 = por %p50, %p51
    %p53 = scmp.ne.s32.totalorder %s44, %s45
    %p54 = scmp.eq.s32.totalorder %s13, 0
    %p55 = por %p53, %p54
    %p56 = scmp.ne.s32.totalorder %s44, %s45
    %p57 = scmp.eq.s32.totalorder %s14, 1
    %p58 = por %p56, %p57
    %p60 = scmp.ne.s32.totalorder %s45, %s59
    %p61 = scmp.eq.s32.totalorder %s14, 0
    %p62 = por %p60, %p61
    %s63 = ssub.s32 %s8, %s15
    %p64 = scmp.eq.s32.totalorder %s63, 0
    %s66 = sadd.s32 %s65, 1
    %s67 = scalar_select %p64, %s65, %s66
    %p70 = pneg %p64
    %p71 = scmp.eq.s32.totalorder %s8, 1
    %p72 = por %p70, %p71
    %p73 = scmp.ne.s32.totalorder %s65, %s68
    %p74 = scmp.eq.s32.totalorder %s8, 0
    %p75 = por %p73, %p74
    %p76 = scmp.ne.s32.totalorder %s65, %s68
    %p77 = scmp.eq.s32.totalorder %s13, 1
    %p78 = por %p76, %p77
    %p79 = scmp.ne.s32.totalorder %s68, %s69
    %p80 = scmp.eq.s32.totalorder %s13, 0
    %p81 = por %p79, %p80
    %p82 = scmp.ne.s32.totalorder %s68, %s69
    %p83 = scmp.eq.s32.totalorder %s14, 1
    %p84 = por %p82, %p83
    %p86 = scmp.ne.s32.totalorder %s69, %s85
    %p87 = scmp.eq.s32.totalorder %s14, 0
    %p88 = por %p86, %p87
    %p89 = scmp.le.s32.totalorder 1, %s8
    %p90 = scmp.lt.s32.totalorder %s8, 3
    %p91 = pnand %p89, %p90
    %p92 = pneg %p91
    // Predicated region
    $region9: #{tpu_custom_call.1} parent=5 // pred_check
      _
    $region10: #{tpu_custom_call.1} parent=5 // pred_check_branch
      %94 = sbr.rel (%p91) target = $region12
    $region11: #{tpu_custom_call.1} parent=5 // pred_region
      %s95 = ssub.s32 %s8, 1
      // Predicated region
      $region13: #{tpu_custom_call.1} parent=11 // pred_check
        %p96 = pneg %p55
      $region14: #{tpu_custom_call.1} parent=11 // pred_check_branch
        %98 = sbr.rel (%p96) target = $region16
      $region15: #{tpu_custom_call.1} parent=11 // pred_region
        _
      $region16: #{tpu_custom_call.1} parent=11 // pred_fallthru
        _
    $region12: #{tpu_custom_call.1} parent=5 // pred_fallthru
      _
    %p99 = scmp.lt.s32.totalorder %s8, 2
    // Predicated region
    $region17: #{tpu_custom_call.1} parent=5 // pred_check
      %p100 = pneg %p99
    $region18: #{tpu_custom_call.1} parent=5 // pred_check_branch
      %102 = sbr.rel (%p100) target = $region20
    $region19: #{tpu_custom_call.1} parent=5 // pred_region
      // Predicated region
      $region21: #{tpu_custom_call.1} parent=19 // pred_check
        %p103 = pneg %p28
      $region22: #{tpu_custom_call.1} parent=19 // pred_check_branch
        %105 = sbr.rel (%p103) target = $region24
      $region23: #{tpu_custom_call.1} parent=19 // pred_region
        %p106 = scmp.lt.s32.totalorder %s8, 1
        %s107 = scalar_select %p106, %s8, 1
        %s108 = smul.addr %s107, 32
        %s109 = smul.addr %s108, 8
        %s110 = scalar_lea.vmem %s0, %s109
      $region24: #{tpu_custom_call.1} parent=19 // pred_fallthru
        _
    $region20: #{tpu_custom_call.1} parent=5 // pred_fallthru
      _
    %p111 = scmp.le.s32.totalorder 1, %s8
    %p112 = scmp.lt.s32.totalorder %s8, 3
    %p113 = pnand %p111, %p112
    %p114 = pneg %p113
    // Predicated region
    $region25: #{tpu_custom_call.1} parent=5 // pred_check
      _
    $region26: #{tpu_custom_call.1} parent=5 // pred_check_branch
      %116 = sbr.rel (%p113) target = $region28
    $region27: #{tpu_custom_call.1} parent=5 // pred_region
      %s117 = ssub.s32 %s8, 1
      %p118 = scmp.lt.s32.totalorder %s13, 1
      %s119 = scalar_select %p118, %s13, 1
      %s120 = smul.addr %s119, 32
      %s121 = smul.addr %s120, 8
      %s122 = scalar_lea.vmem %s0, %s121
      %p123 = pneg %p34
      %p124 = pneg %p31
      %p125 = pneg %p55
      %p126 = pneg %p52
      %p127 = pneg %p81
      %p128 = pneg %p78
      %p129 = scmp.lt.s32.totalorder %s13, 1
      %s130 = scalar_select %p129, %s13, 1
      %s131 = smul.addr %s130, 32
      %s132 = smul.addr %s131, 8
      %s133 = scalar_lea.vmem %s2, %s132
      %p134 = scmp.lt.s32.totalorder %s13, 1
      %s135 = scalar_select %p134, %s13, 1
      %s136 = smul.addr %s135, 32
      %s137 = smul.addr %s136, 8
      %s138 = scalar_lea.vmem %s0, %s137
      %p139 = scmp.lt.s32.totalorder %s13, 1
      %s140 = scalar_select %p139, %s13, 1
      %s141 = smul.addr %s140, 32
      %s142 = smul.addr %s141, 8
      %s143 = scalar_lea.vmem %s2, %s142
      %v145 = vld [vmem:[%s138] sm:$0xff]
      %v146 = vld [vmem:[%s138 + $0x8] sm:$0xff]
      %v147 = vld [vmem:[%s138 + $0x10] sm:$0xff]
      %v148 = vld [vmem:[%s138 + $0x18] sm:$0xff]
      %v149 = vld [vmem:[%s138 + $0x20] sm:$0xff]
      %v150 = vld [vmem:[%s138 + $0x28] sm:$0xff]
      %v151 = vld [vmem:[%s138 + $0x30] sm:$0xff]
      %v152 = vld [vmem:[%s138 + $0x38] sm:$0xff]
      %v153 = vld [vmem:[%s138 + $0x40] sm:$0xff]
      %v154 = vld [vmem:[%s138 + $0x48] sm:$0xff]
      %v155 = vld [vmem:[%s138 + $0x50] sm:$0xff]
      %v156 = vld [vmem:[%s138 + $0x58] sm:$0xff]
      %v157 = vld [vmem:[%s138 + $0x60] sm:$0xff]
      %v158 = vld [vmem:[%s138 + $0x68] sm:$0xff]
      %v159 = vld [vmem:[%s138 + $0x70] sm:$0xff]
      %v160 = vld [vmem:[%s138 + $0x78] sm:$0xff]
      %v161 = vld [vmem:[%s138 + $0x80] sm:$0xff]
      %v162 = vld [vmem:[%s138 + $0x88] sm:$0xff]
      %v163 = vld [vmem:[%s138 + $0x90] sm:$0xff]
      %v164 = vld [vmem:[%s138 + $0x98] sm:$0xff]
      %v165 = vld [vmem:[%s138 + $0xa0] sm:$0xff]
      %v166 = vld [vmem:[%s138 + $0xa8] sm:$0xff]
      %v167 = vld [vmem:[%s138 + $0xb0] sm:$0xff]
      %v168 = vld [vmem:[%s138 + $0xb8] sm:$0xff]
      %v169 = vld [vmem:[%s138 + $0xc0] sm:$0xff]
      %v170 = vld [vmem:[%s138 + $0xc8] sm:$0xff]
      %v171 = vld [vmem:[%s138 + $0xd0] sm:$0xff]
      %v172 = vld [vmem:[%s138 + $0xd8] sm:$0xff]
      %v173 = vld [vmem:[%s138 + $0xe0] sm:$0xff]
      %v174 = vld [vmem:[%s138 + $0xe8] sm:$0xff]
      %v175 = vld [vmem:[%s138 + $0xf0] sm:$0xff]
      %v176 = vld [vmem:[%s138 + $0xf8] sm:$0xff]
      %v177 = vpack.c.bf16 %v145, %v145
      %v178 = vpack.c.bf16 %v146, %v146
      %v179 = vpack.c.bf16 %v147, %v147
      %v180 = vpack.c.bf16 %v148, %v148
      %v181 = vpack.c.bf16 %v149, %v149
      %v182 = vpack.c.bf16 %v150, %v150
      %v183 = vpack.c.bf16 %v151, %v151
      %v184 = vpack.c.bf16 %v152, %v152
      %v185 = vpack.c.bf16 %v153, %v153
      %v186 = vpack.c.bf16 %v154, %v154
      %v187 = vpack.c.bf16 %v155, %v155
      %v188 = vpack.c.bf16 %v156, %v156
      %v189 = vpack.c.bf16 %v157, %v157
      %v190 = vpack.c.bf16 %v158, %v158
      %v191 = vpack.c.bf16 %v159, %v159
      %v192 = vpack.c.bf16 %v160, %v160
      %v193 = vpack.c.bf16 %v161, %v161
      %v194 = vpack.c.bf16 %v162, %v162
      %v195 = vpack.c.bf16 %v163, %v163
      %v196 = vpack.c.bf16 %v164, %v164
      %v197 = vpack.c.bf16 %v165, %v165
      %v198 = vpack.c.bf16 %v166, %v166
      %v199 = vpack.c.bf16 %v167, %v167
      %v200 = vpack.c.bf16 %v168, %v168
      %v201 = vpack.c.bf16 %v169, %v169
      %v202 = vpack.c.bf16 %v170, %v170
      %v203 = vpack.c.bf16 %v171, %v171
      %v204 = vpack.c.bf16 %v172, %v172
      %v205 = vpack.c.bf16 %v173, %v173
      %v206 = vpack.c.bf16 %v174, %v174
      %v207 = vpack.c.bf16 %v175, %v175
      %v208 = vpack.c.bf16 %v176, %v176
      %v241 = vunpack.c.l.b16 %v177
      %v242 = vunpack.c.l.b16 %v178
      %v243 = vunpack.c.l.b16 %v179
      %v244 = vunpack.c.l.b16 %v180
      %v245 = vunpack.c.l.b16 %v181
      %v246 = vunpack.c.l.b16 %v182
      %v247 = vunpack.c.l.b16 %v183
      %v248 = vunpack.c.l.b16 %v184
      %v249 = vunpack.c.l.b16 %v185
      %v250 = vunpack.c.l.b16 %v186
      %v251 = vunpack.c.l.b16 %v187
      %v252 = vunpack.c.l.b16 %v188
      %v253 = vunpack.c.l.b16 %v189
      %v254 = vunpack.c.l.b16 %v190
      %v255 = vunpack.c.l.b16 %v191
      %v256 = vunpack.c.l.b16 %v192
      %v257 = vunpack.c.l.b16 %v193
      %v258 = vunpack.c.l.b16 %v194
      %v259 = vunpack.c.l.b16 %v195
      %v260 = vunpack.c.l.b16 %v196
      %v261 = vunpack.c.l.b16 %v197
      %v262 = vunpack.c.l.b16 %v198
      %v263 = vunpack.c.l.b16 %v199
      %v264 = vunpack.c.l.b16 %v200
      %v265 = vunpack.c.l.b16 %v201
      %v266 = vunpack.c.l.b16 %v202
      %v267 = vunpack.c.l.b16 %v203
      %v268 = vunpack.c.l.b16 %v204
      %v269 = vunpack.c.l.b16 %v205
      %v270 = vunpack.c.l.b16 %v206
      %v271 = vunpack.c.l.b16 %v207
      %v272 = vunpack.c.l.b16 %v208
      %v273 = vpack.c.b16 %v242, %v241
      %v274 = vpack.c.b16 %v244, %v243
      %v275 = vpack.c.b16 %v246, %v245
      %v276 = vpack.c.b16 %v248, %v247
      %v277 = vpack.c.b16 %v250, %v249
      %v278 = vpack.c.b16 %v252, %v251
      %v279 = vpack.c.b16 %v254, %v253
      %v280 = vpack.c.b16 %v256, %v255
      %v281 = vpack.c.b16 %v258, %v257
      %v282 = vpack.c.b16 %v260, %v259
      %v283 = vpack.c.b16 %v262, %v261
      %v284 = vpack.c.b16 %v264, %v263
      %v285 = vpack.c.b16 %v266, %v265
      %v286 = vpack.c.b16 %v268, %v267
      %v287 = vpack.c.b16 %v270, %v269
      %v288 = vpack.c.b16 %v272, %v271
      %v290 = vshrl.u32 0, 16
      %v292 = vrot.slane %v290, 7
      %v293 = vshll.u32 0, 16
      %v295 = vor.u32 %v292, %v293
      %v297 = vshrl.u32 %v273, 16
      %v299 = vrot.slane %v297, 7
      %v300 = vshll.u32 %v273, 16
      %v302 = vor.u32 %v299, %v300
      %v304 = vshrl.u32 %v274, 16
      %v306 = vrot.slane %v304, 7
      %v307 = vshll.u32 %v274, 16
      %v309 = vor.u32 %v306, %v307
      %v311 = vshrl.u32 %v275, 16
      %v313 = vrot.slane %v311, 7
      %v314 = vshll.u32 %v275, 16
      %v316 = vor.u32 %v313, %v314
      %v318 = vshrl.u32 %v276, 16
      %v320 = vrot.slane %v318, 7
      %v321 = vshll.u32 %v276, 16
      %v323 = vor.u32 %v320, %v321
      %v325 = vshrl.u32 %v277, 16
      %v327 = vrot.slane %v325, 7
      %v328 = vshll.u32 %v277, 16
      %v330 = vor.u32 %v327, %v328
      %v332 = vshrl.u32 %v278, 16
      %v334 = vrot.slane %v332, 7
      %v335 = vshll.u32 %v278, 16
      %v337 = vor.u32 %v334, %v335
      %v339 = vshrl.u32 %v279, 16
      %v341 = vrot.slane %v339, 7
      %v342 = vshll.u32 %v279, 16
      %v344 = vor.u32 %v341, %v342
      %v346 = vshrl.u32 %v280, 16
      %v348 = vrot.slane %v346, 7
      %v349 = vshll.u32 %v280, 16
      %v351 = vor.u32 %v348, %v349
      %v353 = vshrl.u32 %v281, 16
      %v355 = vrot.slane %v353, 7
      %v356 = vshll.u32 %v281, 16
      %v358 = vor.u32 %v355, %v356
      %v360 = vshrl.u32 %v282, 16
      %v362 = vrot.slane %v360, 7
      %v363 = vshll.u32 %v282, 16
      %v365 = vor.u32 %v362, %v363
      %v367 = vshrl.u32 %v283, 16
      %v369 = vrot.slane %v367, 7
      %v370 = vshll.u32 %v283, 16
      %v372 = vor.u32 %v369, %v370
      %v374 = vshrl.u32 %v284, 16
      %v376 = vrot.slane %v374, 7
      %v377 = vshll.u32 %v284, 16
      %v379 = vor.u32 %v376, %v377
      %v381 = vshrl.u32 %v285, 16
      %v383 = vrot.slane %v381, 7
      %v384 = vshll.u32 %v285, 16
      %v386 = vor.u32 %v383, %v384
      %v388 = vshrl.u32 %v286, 16
      %v390 = vrot.slane %v388, 7
      %v391 = vshll.u32 %v286, 16
      %v393 = vor.u32 %v390, %v391
      %v395 = vshrl.u32 %v287, 16
      %v397 = vrot.slane %v395, 7
      %v398 = vshll.u32 %v287, 16
      %v400 = vor.u32 %v397, %v398
      %v402 = vshrl.u32 %v288, 16
      %v404 = vrot.slane %v402, 7
      %v405 = vshll.u32 %v288, 16
      %v407 = vor.u32 %v404, %v405
      %vm442 = vcmask 1040384
      %vm443 = vsmask.f32 256
      %vm444 = vmand %vm442, %vm443
      %v445 = vsel %vm444, 0, %v295
      %v446 = vsel %vm444, 0, %v302
      %v447 = vsel %vm444, 0, %v309
      %v448 = vsel %vm444, 0, %v316
      %v449 = vsel %vm444, 0, %v323
      %v450 = vsel %vm444, 0, %v330
      %v451 = vsel %vm444, 0, %v337
      %v452 = vsel %vm444, 0, %v344
      %v453 = vsel %vm444, 0, %v351
      %v454 = vsel %vm444, 0, %v358
      %v455 = vsel %vm444, 0, %v365
      %v456 = vsel %vm444, 0, %v372
      %v457 = vsel %vm444, 0, %v379
      %v458 = vsel %vm444, 0, %v386
      %v459 = vsel %vm444, 0, %v393
      %v460 = vsel %vm444, 0, %v400
      %v461 = vsel %vm444, 0, %v407
      %v462 = vsel %vm444, %v292, 0
      %v463 = vsel %vm444, %v299, 0
      %v464 = vsel %vm444, %v306, 0
      %v465 = vsel %vm444, %v313, 0
      %v466 = vsel %vm444, %v320, 0
      %v467 = vsel %vm444, %v327, 0
      %v468 = vsel %vm444, %v334, 0
      %v469 = vsel %vm444, %v341, 0
      %v470 = vsel %vm444, %v348, 0
      %v471 = vsel %vm444, %v355, 0
      %v472 = vsel %vm444, %v362, 0
      %v473 = vsel %vm444, %v369, 0
      %v474 = vsel %vm444, %v376, 0
      %v475 = vsel %vm444, %v383, 0
      %v476 = vsel %vm444, %v390, 0
      %v477 = vsel %vm444, %v397, 0
      %v478 = vsel %vm444, %v404, 0
      %vm479 = vsmask.f32 7424
      %v481 = vshrl.u32 %v445, 16
      %v483 = vshll.u32 %v445, 16
      %v485 = vrot.slane %v483, 1
      %v486 = vor.u32 %v481, %v485
      %v488 = vshll.u32 %v462, 16
      %v490 = vrot.slane %v488, 1
      %v491 = vsel %vm479, %v486, %v490
      %v493 = vshrl.u32 %v446, 16
      %v495 = vshll.u32 %v446, 16
      %v497 = vrot.slane %v495, 1
      %v498 = vor.u32 %v493, %v497
      %v500 = vshll.u32 %v463, 16
      %v502 = vrot.slane %v500, 1
      %v503 = vsel %vm479, %v498, %v502
      %v505 = vshrl.u32 %v447, 16
      %v507 = vshll.u32 %v447, 16
      %v509 = vrot.slane %v507, 1
      %v510 = vor.u32 %v505, %v509
      %v512 = vshll.u32 %v464, 16
      %v514 = vrot.slane %v512, 1
      %v515 = vsel %vm479, %v510, %v514
      %v517 = vshrl.u32 %v448, 16
      %v519 = vshll.u32 %v448, 16
      %v521 = vrot.slane %v519, 1
      %v522 = vor.u32 %v517, %v521
      %v524 = vshll.u32 %v465, 16
      %v526 = vrot.slane %v524, 1
      %v527 = vsel %vm479, %v522, %v526
      %v529 = vshrl.u32 %v449, 16
      %v531 = vshll.u32 %v449, 16
      %v533 = vrot.slane %v531, 1
      %v534 = vor.u32 %v529, %v533
      %v536 = vshll.u32 %v466, 16
      %v538 = vrot.slane %v536, 1
      %v539 = vsel %vm479, %v534, %v538
      %v541 = vshrl.u32 %v450, 16
      %v543 = vshll.u32 %v450, 16
      %v545 = vrot.slane %v543, 1
      %v546 = vor.u32 %v541, %v545
      %v548 = vshll.u32 %v467, 16
      %v550 = vrot.slane %v548, 1
      %v551 = vsel %vm479, %v546, %v550
      %v553 = vshrl.u32 %v451, 16
      %v555 = vshll.u32 %v451, 16
      %v557 = vrot.slane %v555, 1
      %v558 = vor.u32 %v553, %v557
      %v560 = vshll.u32 %v468, 16
      %v562 = vrot.slane %v560, 1
      %v563 = vsel %vm479, %v558, %v562
      %v565 = vshrl.u32 %v452, 16
      %v567 = vshll.u32 %v452, 16
      %v569 = vrot.slane %v567, 1
      %v570 = vor.u32 %v565, %v569
      %v572 = vshll.u32 %v469, 16
      %v574 = vrot.slane %v572, 1
      %v575 = vsel %vm479, %v570, %v574
      %v577 = vshrl.u32 %v453, 16
      %v579 = vshll.u32 %v453, 16
      %v581 = vrot.slane %v579, 1
      %v582 = vor.u32 %v577, %v581
      %v584 = vshll.u32 %v470, 16
      %v586 = vrot.slane %v584, 1
      %v587 = vsel %vm479, %v582, %v586
      %v589 = vshrl.u32 %v454, 16
      %v591 = vshll.u32 %v454, 16
      %v593 = vrot.slane %v591, 1
      %v594 = vor.u32 %v589, %v593
      %v596 = vshll.u32 %v471, 16
      %v598 = vrot.slane %v596, 1
      %v599 = vsel %vm479, %v594, %v598
      %v601 = vshrl.u32 %v455, 16
      %v603 = vshll.u32 %v455, 16
      %v605 = vrot.slane %v603, 1
      %v606 = vor.u32 %v601, %v605
      %v608 = vshll.u32 %v472, 16
      %v610 = vrot.slane %v608, 1
      %v611 = vsel %vm479, %v606, %v610
      %v613 = vshrl.u32 %v456, 16
      %v615 = vshll.u32 %v456, 16
      %v617 = vrot.slane %v615, 1
      %v618 = vor.u32 %v613, %v617
      %v620 = vshll.u32 %v473, 16
      %v622 = vrot.slane %v620, 1
      %v623 = vsel %vm479, %v618, %v622
      %v625 = vshrl.u32 %v457, 16
      %v627 = vshll.u32 %v457, 16
      %v629 = vrot.slane %v627, 1
      %v630 = vor.u32 %v625, %v629
      %v632 = vshll.u32 %v474, 16
      %v634 = vrot.slane %v632, 1
      %v635 = vsel %vm479, %v630, %v634
      %v637 = vshrl.u32 %v458, 16
      %v639 = vshll.u32 %v458, 16
      %v641 = vrot.slane %v639, 1
      %v642 = vor.u32 %v637, %v641
      %v644 = vshll.u32 %v475, 16
      %v646 = vrot.slane %v644, 1
      %v647 = vsel %vm479, %v642, %v646
      %v649 = vshrl.u32 %v459, 16
      %v651 = vshll.u32 %v459, 16
      %v653 = vrot.slane %v651, 1
      %v654 = vor.u32 %v649, %v653
      %v656 = vshll.u32 %v476, 16
      %v658 = vrot.slane %v656, 1
      %v659 = vsel %vm479, %v654, %v658
      %v661 = vshrl.u32 %v460, 16
      %v663 = vshll.u32 %v460, 16
      %v665 = vrot.slane %v663, 1
      %v666 = vor.u32 %v661, %v665
      %v668 = vshll.u32 %v477, 16
      %v670 = vrot.slane %v668, 1
      %v671 = vsel %vm479, %v666, %v670
      %v673 = vshrl.u32 %v461, 16
      %v675 = vshll.u32 %v461, 16
      %v677 = vrot.slane %v675, 1
      %v678 = vor.u32 %v673, %v677
      %v680 = vshll.u32 %v478, 16
      %v682 = vrot.slane %v680, 1
      %v683 = vsel %vm479, %v678, %v682
      %684 = vrot.lane.b32.xlu0 %v491, 4
      %v685 = vpop.permute.xlu0 %684
      %686 = vrot.lane.b32.xlu0 %v503, 4
      %v687 = vpop.permute.xlu0 %686
      %688 = vrot.lane.b32.xlu0 %v515, 4
      %v689 = vpop.permute.xlu0 %688
      %690 = vrot.lane.b32.xlu0 %v527, 4
      %v691 = vpop.permute.xlu0 %690
      %692 = vrot.lane.b32.xlu0 %v539, 4
      %v693 = vpop.permute.xlu0 %692
      %694 = vrot.lane.b32.xlu0 %v551, 4
      %v695 = vpop.permute.xlu0 %694
      %696 = vrot.lane.b32.xlu0 %v563, 4
      %v697 = vpop.permute.xlu0 %696
      %698 = vrot.lane.b32.xlu0 %v575, 4
      %v699 = vpop.permute.xlu0 %698
      %700 = vrot.lane.b32.xlu0 %v587, 4
      %v701 = vpop.permute.xlu0 %700
      %702 = vrot.lane.b32.xlu0 %v599, 4
      %v703 = vpop.permute.xlu0 %702
      %704 = vrot.lane.b32.xlu0 %v611, 4
      %v705 = vpop.permute.xlu0 %704
      %706 = vrot.lane.b32.xlu0 %v623, 4
      %v707 = vpop.permute.xlu0 %706
      %708 = vrot.lane.b32.xlu0 %v635, 4
      %v709 = vpop.permute.xlu0 %708
      %710 = vrot.lane.b32.xlu0 %v647, 4
      %v711 = vpop.permute.xlu0 %710
      %712 = vrot.lane.b32.xlu0 %v659, 4
      %v713 = vpop.permute.xlu0 %712
      %714 = vrot.lane.b32.xlu0 %v671, 4
      %v715 = vpop.permute.xlu0 %714
      %716 = vrot.lane.b32.xlu0 %v683, 4
      %v717 = vpop.permute.xlu0 %716
      %vm752 = vcmask 1046528
      %v753 = vrot.slane %v445, 1
      %v754 = vrot.slane %v462, 1
      %v755 = vsel %vm752, %v753, %v754
      %v756 = vrot.slane %v446, 1
      %v757 = vrot.slane %v463, 1
      %v758 = vsel %vm752, %v756, %v757
      %v759 = vrot.slane %v447, 1
      %v760 = vrot.slane %v464, 1
      %v761 = vsel %vm752, %v759, %v760
      %v762 = vrot.slane %v448, 1
      %v763 = vrot.slane %v465, 1
      %v764 = vsel %vm752, %v762, %v763
      %v765 = vrot.slane %v449, 1
      %v766 = vrot.slane %v466, 1
      %v767 = vsel %vm752, %v765, %v766
      %v768 = vrot.slane %v450, 1
      %v769 = vrot.slane %v467, 1
      %v770 = vsel %vm752, %v768, %v769
      %v771 = vrot.slane %v451, 1
      %v772 = vrot.slane %v468, 1
      %v773 = vsel %vm752, %v771, %v772
      %v774 = vrot.slane %v452, 1
      %v775 = vrot.slane %v469, 1
      %v776 = vsel %vm752, %v774, %v775
      %v777 = vrot.slane %v453, 1
      %v778 = vrot.slane %v470, 1
      %v779 = vsel %vm752, %v777, %v778
      %v780 = vrot.slane %v454, 1
      %v781 = vrot.slane %v471, 1
      %v782 = vsel %vm752, %v780, %v781
      %v783 = vrot.slane %v455, 1
      %v784 = vrot.slane %v472, 1
      %v785 = vsel %vm752, %v783, %v784
      %v786 = vrot.slane %v456, 1
      %v787 = vrot.slane %v473, 1
      %v788 = vsel %vm752, %v786, %v787
      %v789 = vrot.slane %v457, 1
      %v790 = vrot.slane %v474, 1
      %v791 = vsel %vm752, %v789, %v790
      %v792 = vrot.slane %v458, 1
      %v793 = vrot.slane %v475, 1
      %v794 = vsel %vm752, %v792, %v793
      %v795 = vrot.slane %v459, 1
      %v796 = vrot.slane %v476, 1
      %v797 = vsel %vm752, %v795, %v796
      %v798 = vrot.slane %v460, 1
      %v799 = vrot.slane %v477, 1
      %v800 = vsel %vm752, %v798, %v799
      %v801 = vrot.slane %v461, 1
      %v802 = vrot.slane %v478, 1
      %v803 = vsel %vm752, %v801, %v802
      %804 = vrot.lane.b32.xlu0 %v755, 8
      %v805 = vpop.permute.xlu0 %804
      %806 = vrot.lane.b32.xlu0 %v758, 8
      %v807 = vpop.permute.xlu0 %806
      %808 = vrot.lane.b32.xlu0 %v761, 8
      %v809 = vpop.permute.xlu0 %808
      %810 = vrot.lane.b32.xlu0 %v764, 8
      %v811 = vpop.permute.xlu0 %810
      %812 = vrot.lane.b32.xlu0 %v767, 8
      %v813 = vpop.permute.xlu0 %812
      %814 = vrot.lane.b32.xlu0 %v770, 8
      %v815 = vpop.permute.xlu0 %814
      %816 = vrot.lane.b32.xlu0 %v773, 8
      %v817 = vpop.permute.xlu0 %816
      %818 = vrot.lane.b32.xlu0 %v776, 8
      %v819 = vpop.permute.xlu0 %818
      %820 = vrot.lane.b32.xlu0 %v779, 8
      %v821 = vpop.permute.xlu0 %820
      %822 = vrot.lane.b32.xlu0 %v782, 8
      %v823 = vpop.permute.xlu0 %822
      %824 = vrot.lane.b32.xlu0 %v785, 8
      %v825 = vpop.permute.xlu0 %824
      %826 = vrot.lane.b32.xlu0 %v788, 8
      %v827 = vpop.permute.xlu0 %826
      %828 = vrot.lane.b32.xlu0 %v791, 8
      %v829 = vpop.permute.xlu0 %828
      %830 = vrot.lane.b32.xlu0 %v794, 8
      %v831 = vpop.permute.xlu0 %830
      %832 = vrot.lane.b32.xlu0 %v797, 8
      %v833 = vpop.permute.xlu0 %832
      %834 = vrot.lane.b32.xlu0 %v800, 8
      %v835 = vpop.permute.xlu0 %834
      %836 = vrot.lane.b32.xlu0 %v803, 8
      %v837 = vpop.permute.xlu0 %836
      %vm838 = vcmask 31744
      %v840 = vsel %vm838, %v445, %v685
      %v842 = vsel %vm838, %v446, %v687
      %v844 = vsel %vm838, %v447, %v689
      %v846 = vsel %vm838, %v448, %v691
      %v848 = vsel %vm838, %v449, %v693
      %v850 = vsel %vm838, %v450, %v695
      %v852 = vsel %vm838, %v451, %v697
      %v854 = vsel %vm838, %v452, %v699
      %v856 = vsel %vm838, %v453, %v701
      %v858 = vsel %vm838, %v454, %v703
      %v860 = vsel %vm838, %v455, %v705
      %v862 = vsel %vm838, %v456, %v707
      %v864 = vsel %vm838, %v457, %v709
      %v866 = vsel %vm838, %v458, %v711
      %v868 = vsel %vm838, %v459, %v713
      %v870 = vsel %vm838, %v460, %v715
      %v872 = vsel %vm838, %v461, %v717
      %vm873 = vcmask 64512
      %v875 = vsel %vm873, %v840, %v805
      %v877 = vsel %vm873, %v842, %v807
      %v879 = vsel %vm873, %v844, %v809
      %v881 = vsel %vm873, %v846, %v811
      %v883 = vsel %vm873, %v848, %v813
      %v885 = vsel %vm873, %v850, %v815
      %v887 = vsel %vm873, %v852, %v817
      %v889 = vsel %vm873, %v854, %v819
      %v891 = vsel %vm873, %v856, %v821
      %v893 = vsel %vm873, %v858, %v823
      %v895 = vsel %vm873, %v860, %v825
      %v897 = vsel %vm873, %v862, %v827
      %v899 = vsel %vm873, %v864, %v829
      %v901 = vsel %vm873, %v866, %v831
      %v903 = vsel %vm873, %v868, %v833
      %v905 = vsel %vm873, %v870, %v835
      %v907 = vsel %vm873, %v872, %v837
      %v908 = vld [vmem:[%s1] sm:$0xf]
      %v909 = vld [vmem:[%s1 + $0x4] sm:$0x3]
      %s910 = scalar_lea.vmem %s1, 8
      %v911 = vld [vmem:[%s910] sm:$0xf]
      %v912 = vld [vmem:[%s910 + $0x4] sm:$0x3]
      %v915 = vunpack.c.l.b16 %v911
      %v916 = vunpack.c.l.b16 %v912
      %v917 = vpack.c.b16 %v916, %v915
      %vm918 = vcmask 97280
      %v919 = vsel %vm918, %v877, 0
      %v921 = vsel %vm918, %v879, 0
      %v923 = vsel %vm918, %v881, 0
      %v925 = vsel %vm918, %v883, 0
      %v927 = vsel %vm918, %v885, 0
      %v929 = vsel %vm918, %v887, 0
      %v931 = vsel %vm918, %v889, 0
      %v933 = vsel %vm918, %v891, 0
      %v935 = vsel %vm918, %v893, 0
      %v937 = vsel %vm918, %v895, 0
      %v939 = vsel %vm918, %v897, 0
      %v941 = vsel %vm918, %v899, 0
      %v943 = vsel %vm918, %v901, 0
      %v945 = vsel %vm918, %v903, 0
      %v947 = vsel %vm918, %v905, 0
      %v949 = vsel %vm918, %v907, 0
      %vm951 = vcmask 1045504
      %v953 = vsel %vm951, %v917, 0
      %955 = vmatpush.bf16.msra.mxu0 0
      %956 = vmatpush.bf16.msra.mxu0 0
      %957 = vmatpush.bf16.msra.mxu0 0
      %958 = vmatpush.bf16.msra.mxu0 0
      %959 = vmatpush.bf16.msra.mxu0 0
      %960 = vmatpush.bf16.msra.mxu0 0
      %961 = vmatpush.bf16.msra.mxu0 0
      %962 = vmatpush.bf16.msra.mxu0 %v953
      %963 = vmatmul.bf16.gmra.mxu0 %v919
      %v964 = vpop.f32.mrf.mxu0
      %v965 = vadd.f32 0.0, %v964
      %v966 = vpop.f32.mrf.mxu0
      %v967 = vadd.f32 0.0, %v966
      %968 = vmatmul.bf16.gmra.mxu0 %v921
      %v969 = vpop.f32.mrf.mxu0
      %v970 = vadd.f32 0.0, %v969
      %v971 = vpop.f32.mrf.mxu0
      %v972 = vadd.f32 0.0, %v971
      %973 = vmatmul.bf16.gmra.mxu0 %v923
      %v974 = vpop.f32.mrf.mxu0
      %v975 = vadd.f32 0.0, %v974
      %v976 = vpop.f32.mrf.mxu0
      %v977 = vadd.f32 0.0, %v976
      %978 = vmatmul.bf16.gmra.mxu0 %v925
      %v979 = vpop.f32.mrf.mxu0
      %v980 = vadd.f32 0.0, %v979
      %v981 = vpop.f32.mrf.mxu0
      %v982 = vadd.f32 0.0, %v981
      %983 = vmatmul.bf16.gmra.mxu0 %v927
      %v984 = vpop.f32.mrf.mxu0
      %v985 = vadd.f32 0.0, %v984
      %v986 = vpop.f32.mrf.mxu0
      %v987 = vadd.f32 0.0, %v986
      %988 = vmatmul.bf16.gmra.mxu0 %v929
      %v989 = vpop.f32.mrf.mxu0
      %v990 = vadd.f32 0.0, %v989
      %v991 = vpop.f32.mrf.mxu0
      %v992 = vadd.f32 0.0, %v991
      %993 = vmatmul.bf16.gmra.mxu0 %v931
      %v994 = vpop.f32.mrf.mxu0
      %v995 = vadd.f32 0.0, %v994
      %v996 = vpop.f32.mrf.mxu0
      %v997 = vadd.f32 0.0, %v996
      %998 = vmatmul.bf16.gmra.mxu0 %v933
      %v999 = vpop.f32.mrf.mxu0
      %v1000 = vadd.f32 0.0, %v999
      %v1001 = vpop.f32.mrf.mxu0
      %v1002 = vadd.f32 0.0, %v1001
      %1003 = vmatmul.bf16.gmra.mxu0 %v935
      %v1004 = vpop.f32.mrf.mxu0
      %v1005 = vadd.f32 0.0, %v1004
      %v1006 = vpop.f32.mrf.mxu0
      %v1007 = vadd.f32 0.0, %v1006
      %1008 = vmatmul.bf16.gmra.mxu0 %v937
      %v1009 = vpop.f32.mrf.mxu0
      %v1010 = vadd.f32 0.0, %v1009
      %v1011 = vpop.f32.mrf.mxu0
      %v1012 = vadd.f32 0.0, %v1011
      %1013 = vmatmul.bf16.gmra.mxu0 %v939
      %v1014 = vpop.f32.mrf.mxu0
      %v1015 = vadd.f32 0.0, %v1014
      %v1016 = vpop.f32.mrf.mxu0
      %v1017 = vadd.f32 0.0, %v1016
      %1018 = vmatmul.bf16.gmra.mxu0 %v941
      %v1019 = vpop.f32.mrf.mxu0
      %v1020 = vadd.f32 0.0, %v1019
      %v1021 = vpop.f32.mrf.mxu0
      %v1022 = vadd.f32 0.0, %v1021
      %1023 = vmatmul.bf16.gmra.mxu0 %v943
      %v1024 = vpop.f32.mrf.mxu0
      %v1025 = vadd.f32 0.0, %v1024
      %v1026 = vpop.f32.mrf.mxu0
      %v1027 = vadd.f32 0.0, %v1026
      %1028 = vmatmul.bf16.gmra.mxu0 %v945
      %v1029 = vpop.f32.mrf.mxu0
      %v1030 = vadd.f32 0.0, %v1029
      %v1031 = vpop.f32.mrf.mxu0
      %v1032 = vadd.f32 0.0, %v1031
      %1033 = vmatmul.bf16.gmra.mxu0 %v947
      %v1034 = vpop.f32.mrf.mxu0
      %v1035 = vadd.f32 0.0, %v1034
      %v1036 = vpop.f32.mrf.mxu0
      %v1037 = vadd.f32 0.0, %v1036
      %1038 = vmatmul.bf16.gmra.mxu0 %v949
      %v1039 = vpop.f32.mrf.mxu0
      %v1040 = vadd.f32 0.0, %v1039
      %v1041 = vpop.f32.mrf.mxu0
      %v1042 = vadd.f32 0.0, %v1041
      %1043 = vdwg.mxu0
      %v1046 = vunpack.c.l.b16 %v908
      %v1047 = vunpack.c.l.b16 %v909
      %v1048 = vpack.c.b16 %v1047, %v1046
      %v1049 = vsel %vm918, %v875, 0
      %v1052 = vsel %vm951, %v1048, 0
      %1054 = vmatpush.bf16.msra.mxu0 0
      %1055 = vmatpush.bf16.msra.mxu0 0
      %1056 = vmatpush.bf16.msra.mxu0 0
      %1057 = vmatpush.bf16.msra.mxu0 0
      %1058 = vmatpush.bf16.msra.mxu0 0
      %1059 = vmatpush.bf16.msra.mxu0 0
      %1060 = vmatpush.bf16.msra.mxu0 0
      %1061 = vmatpush.bf16.msra.mxu0 %v1052
      %1062 = vmatmul.bf16.gmra.mxu0 %v1049
      %v1063 = vpop.f32.mrf.mxu0
      %v1064 = vadd.f32 %v965, %v1063
      %v1065 = vpop.f32.mrf.mxu0
      %v1066 = vadd.f32 %v967, %v1065
      %1067 = vmatmul.bf16.gmra.mxu0 %v919
      %v1068 = vpop.f32.mrf.mxu0
      %v1069 = vadd.f32 %v970, %v1068
      %v1070 = vpop.f32.mrf.mxu0
      %v1071 = vadd.f32 %v972, %v1070
      %1072 = vmatmul.bf16.gmra.mxu0 %v921
      %v1073 = vpop.f32.mrf.mxu0
      %v1074 = vadd.f32 %v975, %v1073
      %v1075 = vpop.f32.mrf.mxu0
      %v1076 = vadd.f32 %v977, %v1075
      %1077 = vmatmul.bf16.gmra.mxu0 %v923
      %v1078 = vpop.f32.mrf.mxu0
      %v1079 = vadd.f32 %v980, %v1078
      %v1080 = vpop.f32.mrf.mxu0
      %v1081 = vadd.f32 %v982, %v1080
      %1082 = vmatmul.bf16.gmra.mxu0 %v925
      %v1083 = vpop.f32.mrf.mxu0
      %v1084 = vadd.f32 %v985, %v1083
      %v1085 = vpop.f32.mrf.mxu0
      %v1086 = vadd.f32 %v987, %v1085
      %1087 = vmatmul.bf16.gmra.mxu0 %v927
      %v1088 = vpop.f32.mrf.mxu0
      %v1089 = vadd.f32 %v990, %v1088
      %v1090 = vpop.f32.mrf.mxu0
      %v1091 = vadd.f32 %v992, %v1090
      %1092 = vmatmul.bf16.gmra.mxu0 %v929
      %v1093 = vpop.f32.mrf.mxu0
      %v1094 = vadd.f32 %v995, %v1093
      %v1095 = vpop.f32.mrf.mxu0
      %v1096 = vadd.f32 %v997, %v1095
      %1097 = vmatmul.bf16.gmra.mxu0 %v931
      %v1098 = vpop.f32.mrf.mxu0
      %v1099 = vadd.f32 %v1000, %v1098
      %v1100 = vpop.f32.mrf.mxu0
      %v1101 = vadd.f32 %v1002, %v1100
      %1102 = vmatmul.bf16.gmra.mxu0 %v933
      %v1103 = vpop.f32.mrf.mxu0
      %v1104 = vadd.f32 %v1005, %v1103
      %v1105 = vpop.f32.mrf.mxu0
      %v1106 = vadd.f32 %v1007, %v1105
      %1107 = vmatmul.bf16.gmra.mxu0 %v935
      %v1108 = vpop.f32.mrf.mxu0
      %v1109 = vadd.f32 %v1010, %v1108
      %v1110 = vpop.f32.mrf.mxu0
      %v1111 = vadd.f32 %v1012, %v1110
      %1112 = vmatmul.bf16.gmra.mxu0 %v937
      %v1113 = vpop.f32.mrf.mxu0
      %v1114 = vadd.f32 %v1015, %v1113
      %v1115 = vpop.f32.mrf.mxu0
      %v1116 = vadd.f32 %v1017, %v1115
      %1117 = vmatmul.bf16.gmra.mxu0 %v939
      %v1118 = vpop.f32.mrf.mxu0
      %v1119 = vadd.f32 %v1020, %v1118
      %v1120 = vpop.f32.mrf.mxu0
      %v1121 = vadd.f32 %v1022, %v1120
      %1122 = vmatmul.bf16.gmra.mxu0 %v941
      %v1123 = vpop.f32.mrf.mxu0
      %v1124 = vadd.f32 %v1025, %v1123
      %v1125 = vpop.f32.mrf.mxu0
      %v1126 = vadd.f32 %v1027, %v1125
      %1127 = vmatmul.bf16.gmra.mxu0 %v943
      %v1128 = vpop.f32.mrf.mxu0
      %v1129 = vadd.f32 %v1030, %v1128
      %v1130 = vpop.f32.mrf.mxu0
      %v1131 = vadd.f32 %v1032, %v1130
      %1132 = vmatmul.bf16.gmra.mxu0 %v945
      %v1133 = vpop.f32.mrf.mxu0
      %v1134 = vadd.f32 %v1035, %v1133
      %v1135 = vpop.f32.mrf.mxu0
      %v1136 = vadd.f32 %v1037, %v1135
      %1137 = vmatmul.bf16.gmra.mxu0 %v947
      %v1138 = vpop.f32.mrf.mxu0
      %v1139 = vadd.f32 %v1040, %v1138
      %v1140 = vpop.f32.mrf.mxu0
      %v1141 = vadd.f32 %v1042, %v1140
      %1142 = vdwg.mxu0
      %s1143 = scalar_lea.vmem %s1, 16
      %v1144 = vld [vmem:[%s1143] sm:$0xf]
      %v1145 = vld [vmem:[%s1143 + $0x4] sm:$0x3]
      %v1148 = vunpack.c.l.b16 %v1144
      %v1149 = vunpack.c.l.b16 %v1145
      %v1150 = vpack.c.b16 %v1149, %v1148
      %v1152 = vsel %vm951, %v1150, 0
      %1154 = vmatpush.bf16.msra.mxu0 0
      %1155 = vmatpush.bf16.msra.mxu0 0
      %1156 = vmatpush.bf16.msra.mxu0 0
      %1157 = vmatpush.bf16.msra.mxu0 0
      %1158 = vmatpush.bf16.msra.mxu0 0
      %1159 = vmatpush.bf16.msra.mxu0 0
      %1160 = vmatpush.bf16.msra.mxu0 0
      %1161 = vmatpush.bf16.msra.mxu0 %v1152
      %1162 = vmatmul.bf16.gmra.mxu0 %v921
      %v1163 = vpop.f32.mrf.mxu0
      %v1164 = vadd.f32 0.0, %v1163
      %v1165 = vpop.f32.mrf.mxu0
      %v1166 = vadd.f32 0.0, %v1165
      %1167 = vmatmul.bf16.gmra.mxu0 %v923
      %v1168 = vpop.f32.mrf.mxu0
      %v1169 = vadd.f32 0.0, %v1168
      %v1170 = vpop.f32.mrf.mxu0
      %v1171 = vadd.f32 0.0, %v1170
      %1172 = vmatmul.bf16.gmra.mxu0 %v925
      %v1173 = vpop.f32.mrf.mxu0
      %v1174 = vadd.f32 0.0, %v1173
      %v1175 = vpop.f32.mrf.mxu0
      %v1176 = vadd.f32 0.0, %v1175
      %1177 = vmatmul.bf16.gmra.mxu0 %v927
      %v1178 = vpop.f32.mrf.mxu0
      %v1179 = vadd.f32 0.0, %v1178
      %v1180 = vpop.f32.mrf.mxu0
      %v1181 = vadd.f32 0.0, %v1180
      %1182 = vmatmul.bf16.gmra.mxu0 %v929
      %v1183 = vpop.f32.mrf.mxu0
      %v1184 = vadd.f32 0.0, %v1183
      %v1185 = vpop.f32.mrf.mxu0
      %v1186 = vadd.f32 0.0, %v1185
      %1187 = vmatmul.bf16.gmra.mxu0 %v931
      %v1188 = vpop.f32.mrf.mxu0
      %v1189 = vadd.f32 0.0, %v1188
      %v1190 = vpop.f32.mrf.mxu0
      %v1191 = vadd.f32 0.0, %v1190
      %1192 = vmatmul.bf16.gmra.mxu0 %v933
      %v1193 = vpop.f32.mrf.mxu0
      %v1194 = vadd.f32 0.0, %v1193
      %v1195 = vpop.f32.mrf.mxu0
      %v1196 = vadd.f32 0.0, %v1195
      %1197 = vmatmul.bf16.gmra.mxu0 %v935
      %v1198 = vpop.f32.mrf.mxu0
      %v1199 = vadd.f32 0.0, %v1198
      %v1200 = vpop.f32.mrf.mxu0
      %v1201 = vadd.f32 0.0, %v1200
      %1202 = vmatmul.bf16.gmra.mxu0 %v937
      %v1203 = vpop.f32.mrf.mxu0
      %v1204 = vadd.f32 0.0, %v1203
      %v1205 = vpop.f32.mrf.mxu0
      %v1206 = vadd.f32 0.0, %v1205
      %1207 = vmatmul.bf16.gmra.mxu0 %v939
      %v1208 = vpop.f32.mrf.mxu0
      %v1209 = vadd.f32 0.0, %v1208
      %v1210 = vpop.f32.mrf.mxu0
      %v1211 = vadd.f32 0.0, %v1210
      %1212 = vmatmul.bf16.gmra.mxu0 %v941
      %v1213 = vpop.f32.mrf.mxu0
      %v1214 = vadd.f32 0.0, %v1213
      %v1215 = vpop.f32.mrf.mxu0
      %v1216 = vadd.f32 0.0, %v1215
      %1217 = vmatmul.bf16.gmra.mxu0 %v943
      %v1218 = vpop.f32.mrf.mxu0
      %v1219 = vadd.f32 0.0, %v1218
      %v1220 = vpop.f32.mrf.mxu0
      %v1221 = vadd.f32 0.0, %v1220
      %1222 = vmatmul.bf16.gmra.mxu0 %v945
      %v1223 = vpop.f32.mrf.mxu0
      %v1224 = vadd.f32 0.0, %v1223
      %v1225 = vpop.f32.mrf.mxu0
      %v1226 = vadd.f32 0.0, %v1225
      %1227 = vmatmul.bf16.gmra.mxu0 %v947
      %v1228 = vpop.f32.mrf.mxu0
      %v1229 = vadd.f32 0.0, %v1228
      %v1230 = vpop.f32.mrf.mxu0
      %v1231 = vadd.f32 0.0, %v1230
      %1232 = vmatmul.bf16.gmra.mxu0 %v949
      %v1233 = vpop.f32.mrf.mxu0
      %v1234 = vadd.f32 0.0, %v1233
      %v1235 = vpop.f32.mrf.mxu0
      %v1236 = vadd.f32 0.0, %v1235
      %1237 = vmatmul.bf16.gmra.mxu0 %v1049
      %v1238 = vpop.f32.mrf.mxu0
      %v1239 = vadd.f32 0.0, %v1238
      %v1240 = vpop.f32.mrf.mxu0
      %v1241 = vadd.f32 0.0, %v1240
      %1242 = vdwg.mxu0
      %v1243 = vadd.f32 %v1064, %v1164
      %v1244 = vadd.f32 %v1066, %v1166
      %v1245 = vadd.f32 %v1069, %v1169
      %v1246 = vadd.f32 %v1071, %v1171
      %v1247 = vadd.f32 %v1074, %v1174
      %v1248 = vadd.f32 %v1076, %v1176
      %v1249 = vadd.f32 %v1079, %v1179
      %v1250 = vadd.f32 %v1081, %v1181
      %v1251 = vadd.f32 %v1084, %v1184
      %v1252 = vadd.f32 %v1086, %v1186
      %v1253 = vadd.f32 %v1089, %v1189
      %v1254 = vadd.f32 %v1091, %v1191
      %v1255 = vadd.f32 %v1094, %v1194
      %v1256 = vadd.f32 %v1096, %v1196
      %v1257 = vadd.f32 %v1099, %v1199
      %v1258 = vadd.f32 %v1101, %v1201
      %v1259 = vadd.f32 %v1104, %v1204
      %v1260 = vadd.f32 %v1106, %v1206
      %v1261 = vadd.f32 %v1109, %v1209
      %v1262 = vadd.f32 %v1111, %v1211
      %v1263 = vadd.f32 %v1114, %v1214
      %v1264 = vadd.f32 %v1116, %v1216
      %v1265 = vadd.f32 %v1119, %v1219
      %v1266 = vadd.f32 %v1121, %v1221
      %v1267 = vadd.f32 %v1124, %v1224
      %v1268 = vadd.f32 %v1126, %v1226
      %v1269 = vadd.f32 %v1129, %v1229
      %v1270 = vadd.f32 %v1131, %v1231
      %v1271 = vadd.f32 %v1134, %v1234
      %v1272 = vadd.f32 %v1136, %v1236
      %v1273 = vadd.f32 %v1139, %v1239
      %v1274 = vadd.f32 %v1141, %v1241
      %v1275 = vadd.f32 %v1243, %v1244
      %v1276 = vadd.f32 %v1275, %v1245
      %v1277 = vadd.f32 %v1276, %v1246
      %v1278 = vadd.f32 %v1277, %v1247
      %v1279 = vadd.f32 %v1278, %v1248
      %v1280 = vadd.f32 %v1279, %v1249
      %v1281 = vadd.f32 %v1280, %v1250
      %v1282 = vadd.f32 %v1281, %v1251
      %v1283 = vadd.f32 %v1282, %v1252
      %v1284 = vadd.f32 %v1283, %v1253
      %v1285 = vadd.f32 %v1284, %v1254
      %v1286 = vadd.f32 %v1285, %v1255
      %v1287 = vadd.f32 %v1286, %v1256
      %v1288 = vadd.f32 %v1287, %v1257
      %v1289 = vadd.f32 %v1288, %v1258
      %v1290 = vadd.f32 %v1289, %v1259
      %v1291 = vadd.f32 %v1290, %v1260
      %v1292 = vadd.f32 %v1291, %v1261
      %v1293 = vadd.f32 %v1292, %v1262
      %v1294 = vadd.f32 %v1293, %v1263
      %v1295 = vadd.f32 %v1294, %v1264
      %v1296 = vadd.f32 %v1295, %v1265
      %v1297 = vadd.f32 %v1296, %v1266
      %v1298 = vadd.f32 %v1297, %v1267
      %v1299 = vadd.f32 %v1298, %v1268
      %v1300 = vadd.f32 %v1299, %v1269
      %v1301 = vadd.f32 %v1300, %v1270
      %v1302 = vadd.f32 %v1301, %v1271
      %v1303 = vadd.f32 %v1302, %v1272
      %v1304 = vadd.f32 %v1303, %v1273
      %v1305 = vadd.f32 %v1304, %v1274
      %v1306 = vrot.slane %v1305, 4
      %v1307 = vadd.f32 %v1305, %v1306
      %v1308 = vrot.slane %v1307, 2
      %v1309 = vadd.f32 %v1307, %v1308
      %v1310 = vrot.slane %v1309, 1
      %v1311 = vadd.f32 %v1309, %v1310
      %v1312 = vmul.f32 %v1311, 0.00390625
      %v1313 = vsub.f32 %v1243, %v1312
      %v1314 = vsub.f32 %v1244, %v1312
      %v1315 = vsub.f32 %v1245, %v1312
      %v1316 = vsub.f32 %v1246, %v1312
      %v1317 = vsub.f32 %v1247, %v1312
      %v1318 = vsub.f32 %v1248, %v1312
      %v1319 = vsub.f32 %v1249, %v1312
      %v1320 = vsub.f32 %v1250, %v1312
      %v1321 = vsub.f32 %v1251, %v1312
      %v1322 = vsub.f32 %v1252, %v1312
      %v1323 = vsub.f32 %v1253, %v1312
      %v1324 = vsub.f32 %v1254, %v1312
      %v1325 = vsub.f32 %v1255, %v1312
      %v1326 = vsub.f32 %v1256, %v1312
      %v1327 = vsub.f32 %v1257, %v1312
      %v1328 = vsub.f32 %v1258, %v1312
      %v1329 = vsub.f32 %v1259, %v1312
      %v1330 = vsub.f32 %v1260, %v1312
      %v1331 = vsub.f32 %v1261, %v1312
      %v1332 = vsub.f32 %v1262, %v1312
      %v1333 = vsub.f32 %v1263, %v1312
      %v1334 = vsub.f32 %v1264, %v1312
      %v1335 = vsub.f32 %v1265, %v1312
      %v1336 = vsub.f32 %v1266, %v1312
      %v1337 = vsub.f32 %v1267, %v1312
      %v1338 = vsub.f32 %v1268, %v1312
      %v1339 = vsub.f32 %v1269, %v1312
      %v1340 = vsub.f32 %v1270, %v1312
      %v1341 = vsub.f32 %v1271, %v1312
      %v1342 = vsub.f32 %v1272, %v1312
      %v1343 = vsub.f32 %v1273, %v1312
      %v1344 = vsub.f32 %v1274, %v1312
      %v1345 = vmul.f32 %v1313, %v1313
      %v1346 = vmul.f32 %v1314, %v1314
      %v1347 = vmul.f32 %v1315, %v1315
      %v1348 = vmul.f32 %v1316, %v1316
      %v1349 = vmul.f32 %v1317, %v1317
      %v1350 = vmul.f32 %v1318, %v1318
      %v1351 = vmul.f32 %v1319, %v1319
      %v1352 = vmul.f32 %v1320, %v1320
      %v1353 = vmul.f32 %v1321, %v1321
      %v1354 = vmul.f32 %v1322, %v1322
      %v1355 = vmul.f32 %v1323, %v1323
      %v1356 = vmul.f32 %v1324, %v1324
      %v1357 = vmul.f32 %v1325, %v1325
      %v1358 = vmul.f32 %v1326, %v1326
      %v1359 = vmul.f32 %v1327, %v1327
      %v1360 = vmul.f32 %v1328, %v1328
      %v1361 = vmul.f32 %v1329, %v1329
      %v1362 = vmul.f32 %v1330, %v1330
      %v1363 = vmul.f32 %v1331, %v1331
      %v1364 = vmul.f32 %v1332, %v1332
      %v1365 = vmul.f32 %v1333, %v1333
      %v1366 = vmul.f32 %v1334, %v1334
      %v1367 = vmul.f32 %v1335, %v1335
      %v1368 = vmul.f32 %v1336, %v1336
      %v1369 = vmul.f32 %v1337, %v1337
      %v1370 = vmul.f32 %v1338, %v1338
      %v1371 = vmul.f32 %v1339, %v1339
      %v1372 = vmul.f32 %v1340, %v1340
      %v1373 = vmul.f32 %v1341, %v1341
      %v1374 = vmul.f32 %v1342, %v1342
      %v1375 = vmul.f32 %v1343, %v1343
      %v1376 = vmul.f32 %v1344, %v1344
      %v1377 = vadd.f32 %v1345, %v1346
      %v1378 = vadd.f32 %v1377, %v1347
      %v1379 = vadd.f32 %v1378, %v1348
      %v1380 = vadd.f32 %v1379, %v1349
      %v1381 = vadd.f32 %v1380, %v1350
      %v1382 = vadd.f32 %v1381, %v1351
      %v1383 = vadd.f32 %v1382, %v1352
      %v1384 = vadd.f32 %v1383, %v1353
      %v1385 = vadd.f32 %v1384, %v1354
      %v1386 = vadd.f32 %v1385, %v1355
      %v1387 = vadd.f32 %v1386, %v1356
      %v1388 = vadd.f32 %v1387, %v1357
      %v1389 = vadd.f32 %v1388, %v1358
      %v1390 = vadd.f32 %v1389, %v1359
      %v1391 = vadd.f32 %v1390, %v1360
      %v1392 = vadd.f32 %v1391, %v1361
      %v1393 = vadd.f32 %v1392, %v1362
      %v1394 = vadd.f32 %v1393, %v1363
      %v1395 = vadd.f32 %v1394, %v1364
      %v1396 = vadd.f32 %v1395, %v1365
      %v1397 = vadd.f32 %v1396, %v1366
      %v1398 = vadd.f32 %v1397, %v1367
      %v1399 = vadd.f32 %v1398, %v1368
      %v1400 = vadd.f32 %v1399, %v1369
      %v1401 = vadd.f32 %v1400, %v1370
      %v1402 = vadd.f32 %v1401, %v1371
      %v1403 = vadd.f32 %v1402, %v1372
      %v1404 = vadd.f32 %v1403, %v1373
      %v1405 = vadd.f32 %v1404, %v1374
      %v1406 = vadd.f32 %v1405, %v1375
      %v1407 = vadd.f32 %v1406, %v1376
      %v1408 = vrot.slane %v1407, 4
      %v1409 = vadd.f32 %v1407, %v1408
      %v1410 = vrot.slane %v1409, 2
      %v1411 = vadd.f32 %v1409, %v1410
      %v1412 = vrot.slane %v1411, 1
      %v1413 = vadd.f32 %v1411, %v1412
      %v1414 = vmul.f32 %v1413, 0.00390625
      %v1415 = vadd.f32 %v1414, 1e-05
      %v1416 = vrsqrt.pop %v1415
      %v1417 = vmul.f32 %v1416, %v1415
      %v1418 = vmul.f32 %v1417, %v1416
      %v1419 = vmul.f32 0.5, %v1418
      %v1420 = vsub.f32 1.5, %v1419
      %v1421 = vmul.f32 %v1416, %v1420
      %vm1422 = vweird.f32 %v1415
      %vm1423 = vweird.f32 %v1416
      %vm1424 = vmor %vm1422, %vm1423
      %v1425 = vsel %vm1424, %v1416, %v1421
      %v1426 = vmul.f32 %v1313, %v1425
      %v1427 = vmul.f32 %v1314, %v1425
      %v1428 = vmul.f32 %v1315, %v1425
      %v1429 = vmul.f32 %v1316, %v1425
      %v1430 = vmul.f32 %v1317, %v1425
      %v1431 = vmul.f32 %v1318, %v1425
      %v1432 = vmul.f32 %v1319, %v1425
      %v1433 = vmul.f32 %v1320, %v1425
      %v1434 = vmul.f32 %v1321, %v1425
      %v1435 = vmul.f32 %v1322, %v1425
      %v1436 = vmul.f32 %v1323, %v1425
      %v1437 = vmul.f32 %v1324, %v1425
      %v1438 = vmul.f32 %v1325, %v1425
      %v1439 = vmul.f32 %v1326, %v1425
      %v1440 = vmul.f32 %v1327, %v1425
      %v1441 = vmul.f32 %v1328, %v1425
      %v1442 = vmul.f32 %v1329, %v1425
      %v1443 = vmul.f32 %v1330, %v1425
      %v1444 = vmul.f32 %v1331, %v1425
      %v1445 = vmul.f32 %v1332, %v1425
      %v1446 = vmul.f32 %v1333, %v1425
      %v1447 = vmul.f32 %v1334, %v1425
      %v1448 = vmul.f32 %v1335, %v1425
      %v1449 = vmul.f32 %v1336, %v1425
      %v1450 = vmul.f32 %v1337, %v1425
      %v1451 = vmul.f32 %v1338, %v1425
      %v1452 = vmul.f32 %v1339, %v1425
      %v1453 = vmul.f32 %v1340, %v1425
      %v1454 = vmul.f32 %v1341, %v1425
      %v1455 = vmul.f32 %v1342, %v1425
      %v1456 = vmul.f32 %v1343, %v1425
      %v1457 = vmul.f32 %v1344, %v1425
      %1458 = vst.msk [vmem:[%s143] sm:$0xff] %vm838, %v1426
      %1459 = vst.msk [vmem:[%s143 + $0x8] sm:$0xff] %vm838, %v1427
      %1460 = vst.msk [vmem:[%s143 + $0x10] sm:$0xff] %vm838, %v1428
      %1461 = vst.msk [vmem:[%s143 + $0x18] sm:$0xff] %vm838, %v1429
      %1462 = vst.msk [vmem:[%s143 + $0x20] sm:$0xff] %vm838, %v1430
      %1463 = vst.msk [vmem:[%s143 + $0x28] sm:$0xff] %vm838, %v1431
      %1464 = vst.msk [vmem:[%s143 + $0x30] sm:$0xff] %vm838, %v1432
      %1465 = vst.msk [vmem:[%s143 + $0x38] sm:$0xff] %vm838, %v1433
      %1466 = vst.msk [vmem:[%s143 + $0x40] sm:$0xff] %vm838, %v1434
      %1467 = vst.msk [vmem:[%s143 + $0x48] sm:$0xff] %vm838, %v1435
      %1468 = vst.msk [vmem:[%s143 + $0x50] sm:$0xff] %vm838, %v1436
      %1469 = vst.msk [vmem:[%s143 + $0x58] sm:$0xff] %vm838, %v1437
      %1470 = vst.msk [vmem:[%s143 + $0x60] sm:$0xff] %vm838, %v1438
      %1471 = vst.msk [vmem:[%s143 + $0x68] sm:$0xff] %vm838, %v1439
      %1472 = vst.msk [vmem:[%s143 + $0x70] sm:$0xff] %vm838, %v1440
      %1473 = vst.msk [vmem:[%s143 + $0x78] sm:$0xff] %vm838, %v1441
      %1474 = vst.msk [vmem:[%s143 + $0x80] sm:$0xff] %vm838, %v1442
      %1475 = vst.msk [vmem:[%s143 + $0x88] sm:$0xff] %vm838, %v1443
      %1476 = vst.msk [vmem:[%s143 + $0x90] sm:$0xff] %vm838, %v1444
      %1477 = vst.msk [vmem:[%s143 + $0x98] sm:$0xff] %vm838, %v1445
      %1478 = vst.msk [vmem:[%s143 + $0xa0] sm:$0xff] %vm838, %v1446
      %1479 = vst.msk [vmem:[%s143 + $0xa8] sm:$0xff] %vm838, %v1447
      %1480 = vst.msk [vmem:[%s143 + $0xb0] sm:$0xff] %vm838, %v1448
      %1481 = vst.msk [vmem:[%s143 + $0xb8] sm:$0xff] %vm838, %v1449
      %1482 = vst.msk [vmem:[%s143 + $0xc0] sm:$0xff] %vm838, %v1450
      %1483 = vst.msk [vmem:[%s143 + $0xc8] sm:$0xff] %vm838, %v1451
      %1484 = vst.msk [vmem:[%s143 + $0xd0] sm:$0xff] %vm838, %v1452
      %1485 = vst.msk [vmem:[%s143 + $0xd8] sm:$0xff] %vm838, %v1453
      %1486 = vst.msk [vmem:[%s143 + $0xe0] sm:$0xff] %vm838, %v1454
      %1487 = vst.msk [vmem:[%s143 + $0xe8] sm:$0xff] %vm838, %v1455
      %1488 = vst.msk [vmem:[%s143 + $0xf0] sm:$0xff] %vm838, %v1456
      %1489 = vst.msk [vmem:[%s143 + $0xf8] sm:$0xff] %vm838, %v1457
      %p1490 = scmp.lt.s32.totalorder %s13, 1
      %s1491 = scalar_select %p1490, %s13, 1
      %s1492 = smul.addr %s1491, 32
      %s1493 = smul.addr %s1492, 8
      %s1494 = scalar_lea.vmem %s2, %s1493
      // Predicated region
      $region29: #{tpu_custom_call.1} parent=27 // pred_check
        %p1495 = pneg %p78
      $region30: #{tpu_custom_call.1} parent=27 // pred_check_branch
        %1497 = sbr.rel (%p1495) target = $region32
      $region31: #{tpu_custom_call.1} parent=27 // pred_region
        _
      $region32: #{tpu_custom_call.1} parent=27 // pred_fallthru
        _
    $region28: #{tpu_custom_call.1} parent=5 // pred_fallthru
      _
    %p1498 = scmp.le.s32.totalorder 2, %s8
    // Predicated region
    $region33: #{tpu_custom_call.1} parent=5 // pred_check
      %p1499 = pneg %p1498
    $region34: #{tpu_custom_call.1} parent=5 // pred_check_branch
      %1501 = sbr.rel (%p1499) target = $region36
    $region35: #{tpu_custom_call.1} parent=5 // pred_region
      %s1502 = ssub.s32 %s8, 2
      // Predicated region
      $region37: #{tpu_custom_call.1} parent=35 // pred_check
        %p1503 = pneg %p84
      $region38: #{tpu_custom_call.1} parent=35 // pred_check_branch
        %1505 = sbr.rel (%p1503) target = $region40
      $region39: #{tpu_custom_call.1} parent=35 // pred_region
        %p1506 = scmp.lt.s32.totalorder %s14, 1
        %s1507 = scalar_select %p1506, %s14, 1
        %s1508 = smul.addr %s1507, 32
        %s1509 = smul.addr %s1508, 8
        %s1510 = scalar_lea.vmem %s2, %s1509
      $region40: #{tpu_custom_call.1} parent=35 // pred_fallthru
        _
    $region36: #{tpu_custom_call.1} parent=5 // pred_fallthru
      _
  $region6: #{tpu_custom_call.1} parent=0 // loop_footer
    %s12 = sadd.s32 1, %s8
  $region7: #{tpu_custom_call.1} parent=0 // loop_footer_branch
    %7 = sbr.rel target = $region3
  $region8: #{tpu_custom_call.1} parent=0 // loop_exit
    _

</llo_original>
